<compile_context>
chip_gen: v7x
topology: tpu7x:2x2x1
jax: 0.10.0
libtpu: 0.0.40
codegen_flags: <defaults>
</compile_context>

<pallas_src>
import jax
import jax.numpy as jnp
from jax.experimental import pallas as pl
from jax.experimental.pallas import tpu as pltpu

HIDDEN = 128
SUBLANE = 8


def _round_up(x, m):
    return (x + m - 1) // m * m


def _mlp_kernel(x_ref, w1_ref, b1_ref, w2_ref, b2_ref, w3_ref, b3_ref, out_ref):
    # Whole batch tile + all weights resident in VMEM: 3 MXU matmuls with f32
    # accumulation; bias add / ReLU stay in f32 on the VPU (safe on v5e, free
    # on v6e/v7x).
    x = x_ref[...]                                                    # [tb, D_in]
    h1 = jnp.dot(x, w1_ref[...], preferred_element_type=jnp.float32)
    h1 = jnp.maximum(h1 + b1_ref[...], 0.0)
    h2 = jnp.dot(h1.astype(w2_ref.dtype), w2_ref[...],
                 preferred_element_type=jnp.float32)
    h2 = jnp.maximum(h2 + b2_ref[...], 0.0)
    out = jnp.dot(h2.astype(w3_ref.dtype), w3_ref[...],
                  preferred_element_type=jnp.float32)
    out_ref[...] = (out + b3_ref[...]).astype(out_ref.dtype)


def prepare_params(params, compute_dtype=jnp.bfloat16):
    """One-time weight preparation: cast weights to the compute dtype and keep
    biases in f32 row vectors. Call once; reuse across forward() calls so the
    per-call wrapper only touches `state`."""
    cdt = jnp.dtype(compute_dtype)

    def bias(v):
        return jnp.asarray(v, jnp.float32).reshape(1, -1)

    return dict(
        w1=jnp.asarray(params["w1"], cdt),
        w2=jnp.asarray(params["w2"], cdt),
        w3=jnp.asarray(params["w3"], cdt),
        b1=bias(params["b1"]),
        b2=bias(params["b2"]),
        b3=bias(params["b3"]),
    )


def _choose_tiling(B, tile_b):
    """Pick (B_pad, tb, grid). Batch rows are bucketed to a power-of-two
    multiple of 8 so ragged batch sizes reuse the same compiled kernel, and the
    grid has >=2 steps whenever B >= 16 so the 'parallel' axis can shard across
    both TensorCores on v7x."""
    tile_b = _round_up(max(tile_b, SUBLANE), SUBLANE)
    B_pad = max(SUBLANE, pl.next_power_of_2(_round_up(B, SUBLANE)))
    if B_pad <= tile_b:
        tb = B_pad // 2 if B_pad >= 2 * SUBLANE else B_pad
    else:
        tb = tile_b
    grid = pl.cdiv(B_pad, tb)
    B_pad = grid * tb
    return B_pad, tb, grid


def policy_gradient_forward(state, prepped, *, tile_b=2048):
    """state: [B, D_in] float32. prepped: output of prepare_params()."""
    B, D_in = state.shape
    w1, w2, w3 = prepped["w1"], prepped["w2"], prepped["w3"]
    b1, b2, b3 = prepped["b1"], prepped["b2"], prepped["b3"]
    H = w1.shape[1]
    A = w3.shape[1]
    cdt = jnp.dtype(w1.dtype)

    B_pad, tb, grid = _choose_tiling(B, tile_b)

    # Only batch rows are zero-padded (mathematically inert, sliced away);
    # feature dims stay natural to keep HBM traffic minimal.
    x = state.astype(cdt)
    if B_pad != B:
        x = jnp.zeros((B_pad, D_in), cdt).at[:B].set(x)

    def rep(shape):  # constant block index -> stays resident in VMEM
        return pl.BlockSpec(shape, lambda i: (0,) * len(shape))

    # Advisory cost estimate for XLA scheduling around the custom call.
    flops = 2 * B_pad * (D_in * H + H * H + H * A)
    bytes_accessed = (
        B_pad * D_in * cdt.itemsize
        + (w1.size + w2.size + w3.size) * cdt.itemsize
        + (b1.size + b2.size + b3.size) * 4
        + B_pad * A * 4
    )
    cost = pl.CostEstimate(flops=flops, transcendentals=0,
                           bytes_accessed=bytes_accessed)

    # VMEM budget: double-buffered x / out tiles, resident weights (Pallas
    # double-buffers them too), plus the materialized f32 h1/h2 intermediates
    # and their bf16 casts feeding matmuls 2/3.
    vmem_bytes = (
        2 * tb * D_in * cdt.itemsize
        + 2 * tb * A * 4
        + 2 * (w1.size + w2.size + w3.size) * cdt.itemsize
        + 2 * (b1.size + b2.size + b3.size) * 4
        + 2 * tb * H * 4
        + 2 * tb * H * cdt.itemsize
    )
    cp_kwargs = dict(dimension_semantics=("parallel",))
    if vmem_bytes > (28 << 20):
        # Cap well below v7x's 64 MiB physical VMEM (headroom for Mosaic scratch).
        cp_kwargs["vmem_limit_bytes"] = min(vmem_bytes + (4 << 20), 48 << 20)

    out_padded = pl.pallas_call(
        _mlp_kernel,
        out_shape=jax.ShapeDtypeStruct((B_pad, A), jnp.float32),
        grid_spec=pltpu.PrefetchScalarGridSpec(
            num_scalar_prefetch=0,
            grid=(grid,),
            in_specs=[
                pl.BlockSpec((tb, D_in), lambda i: (i, 0)),   # x
                rep((D_in, H)),                               # w1
                rep((1, H)),                                  # b1
                rep((H, H)),                                  # w2
                rep((1, H)),                                  # b2
                rep((H, A)),                                  # w3
                rep((1, A)),                                  # b3
            ],
            out_specs=pl.BlockSpec((tb, A), lambda i: (i, 0)),
        ),
        compiler_params=pltpu.CompilerParams(**cp_kwargs),
        cost_estimate=cost,
    )(x, w1, b1, w2, b2, w3, b3)

    return out_padded[:B]


def init_params(key, input_dims, n_actions):
    """Deterministic init mimicking nn.Linear default (U(-1/sqrt(fan_in), ..))."""
    def linear(key, fan_in, fan_out):
        kw, kb = jax.random.split(key)
        bound = 1.0 / jnp.sqrt(float(fan_in))
        w = jax.random.uniform(kw, (fan_in, fan_out), jnp.float32, -bound, bound)
        b = jax.random.uniform(kb, (fan_out,), jnp.float32, -bound, bound)
        return w, b

    k1, k2, k3 = jax.random.split(key, 3)
    w1, b1 = linear(k1, input_dims, HIDDEN)
    w2, b2 = linear(k2, HIDDEN, HIDDEN)
    w3, b3 = linear(k3, HIDDEN, n_actions)
    return dict(w1=w1, b1=b1, w2=w2, b2=b2, w3=w3, b3=b3)


def reference_forward(state, p, dtype=jnp.float32):
    def lin(x, w, b):
        return (jnp.dot(x.astype(dtype), w.astype(dtype),
                        preferred_element_type=jnp.float32)
                + b.reshape(1, -1).astype(jnp.float32))
    h1 = jnp.maximum(lin(state, p["w1"], p["b1"]), 0.0)
    h2 = jnp.maximum(lin(h1, p["w2"], p["b2"]), 0.0)
    return lin(h2, p["w3"], p["b3"])


# TODO(synk): only the forward pass is implemented; the Adam optimizer /
# training step and device placement from the PyTorch module have no Pallas
# equivalent here.

if __name__ == "__main__":
    key = jax.random.PRNGKey(0)
    k_param, k_state = jax.random.split(key)

    # Small shapes matching the module: input_dims=(8,), 4 actions.
    B, D_IN, N_ACTIONS = 8, 8, 4
    params = init_params(k_param, D_IN, N_ACTIONS)
    state = jax.random.normal(k_state, (B, D_IN), jnp.float32)

    # 1) f32 path, small batch -> single grid step, no padding at all.
    pf32 = prepare_params(params, jnp.float32)
    out = jax.block_until_ready(policy_gradient_forward(state, pf32))
    ref = reference_forward(state, params)
    assert out.shape == (B, N_ACTIONS)
    assert jnp.allclose(out, ref, atol=1e-4, rtol=1e-4), "mismatch (small f32)"

    # 2) bf16 default path, ragged larger batch -> bucketed, 2-step parallel grid.
    B2 = 1000
    state2 = jax.random.normal(jax.random.PRNGKey(1), (B2, D_IN), jnp.float32)
    pbf16 = prepare_params(params)                     # bf16 weights, f32 biases
    out2 = jax.block_until_ready(policy_gradient_forward(state2, pbf16))
    ref2 = reference_forward(state2, params, dtype=jnp.bfloat16)
    assert out2.shape == (B2, N_ACTIONS)
    assert jnp.allclose(out2, ref2, atol=5e-2, rtol=5e-2), "mismatch (bf16)"

    # 3) f32 path on the larger batch too (tight tolerance, exercises row padding).
    out3 = jax.block_until_ready(policy_gradient_forward(state2, pf32))
    ref3 = reference_forward(state2, params)
    assert jnp.allclose(out3, ref3, atol=1e-4, rtol=1e-4), "mismatch (tiled f32)"

    print("KERNEL_OK")
</pallas_src>

<mosaic_0001>
module attributes {stable_mosaic.version = 11 : i64} {
  func.func @_mlp_kernel(%arg0: i32, %arg1: memref<8x8xf32, #tpu.memory_space<vmem>>, %arg2: memref<8x128xf32, #tpu.memory_space<vmem>>, %arg3: memref<1x128xf32, #tpu.memory_space<vmem>>, %arg4: memref<128x128xf32, #tpu.memory_space<vmem>>, %arg5: memref<1x128xf32, #tpu.memory_space<vmem>>, %arg6: memref<128x4xf32, #tpu.memory_space<vmem>>, %arg7: memref<1x4xf32, #tpu.memory_space<vmem>>, %arg8: memref<8x4xf32, #tpu.memory_space<vmem>>) attributes {dimension_semantics = [#tpu.dimension_semantics<parallel>], iteration_bounds = array<i64: 1>, scalar_prefetch = 0 : i64, scratch_operands = 0 : i64, tpu.core_type = #tpu.core_type<tc>, window_params = [{transform_indices = @transform_0, window_bounds = array<i64: 8, 8>}, {pipeline_mode = #tpu.pipeline_mode<synchronous>, transform_indices = @transform_1, window_bounds = array<i64: 8, 128>}, {pipeline_mode = #tpu.pipeline_mode<synchronous>, transform_indices = @transform_2, window_bounds = array<i64: 1, 128>}, {pipeline_mode = #tpu.pipeline_mode<synchronous>, transform_indices = @transform_3, window_bounds = array<i64: 128, 128>}, {pipeline_mode = #tpu.pipeline_mode<synchronous>, transform_indices = @transform_4, window_bounds = array<i64: 1, 128>}, {pipeline_mode = #tpu.pipeline_mode<synchronous>, transform_indices = @transform_5, window_bounds = array<i64: 128, 4>}, {pipeline_mode = #tpu.pipeline_mode<synchronous>, transform_indices = @transform_6, window_bounds = array<i64: 1, 4>}, {transform_indices = @transform_7, window_bounds = array<i64: 8, 4>}]} {
    %c0 = arith.constant 0 : index
    %c0_0 = arith.constant 0 : index
    %0 = vector.load %arg1[%c0, %c0_0] : memref<8x8xf32, #tpu.memory_space<vmem>>, vector<8x8xf32>
    %c0_1 = arith.constant 0 : index
    %c0_2 = arith.constant 0 : index
    %1 = vector.load %arg2[%c0_1, %c0_2] : memref<8x128xf32, #tpu.memory_space<vmem>>, vector<8x128xf32>
    %cst = arith.constant dense<0.000000e+00> : vector<8x128xf32>
    %2 = tpu.matmul %0, %1, %cst {dimension_numbers = #tpu.dot_dimension_numbers<[1], [0], [0], [1], [0, 0, 1, 1], [], []>} : vector<8x8xf32>, vector<8x128xf32>, vector<8x128xf32> -> vector<8x128xf32>
    %c0_3 = arith.constant 0 : index
    %c0_4 = arith.constant 0 : index
    %3 = vector.load %arg3[%c0_3, %c0_4] : memref<1x128xf32, #tpu.memory_space<vmem>>, vector<1x128xf32>
    %4 = vector.broadcast %3 : vector<1x128xf32> to vector<8x128xf32>
    %5 = arith.addf %2, %4 : vector<8x128xf32>
    %cst_5 = arith.constant 0.000000e+00 : f32
    %6 = vector.broadcast %cst_5 : f32 to vector<8x128xf32>
    %7 = arith.maximumf %5, %6 : vector<8x128xf32>
    %c0_6 = arith.constant 0 : index
    %c0_7 = arith.constant 0 : index
    %8 = vector.load %arg4[%c0_6, %c0_7] : memref<128x128xf32, #tpu.memory_space<vmem>>, vector<128x128xf32>
    %cst_8 = arith.constant dense<0.000000e+00> : vector<8x128xf32>
    %9 = tpu.matmul %7, %8, %cst_8 {dimension_numbers = #tpu.dot_dimension_numbers<[1], [0], [0], [1], [0, 0, 1, 1], [], []>} : vector<8x128xf32>, vector<128x128xf32>, vector<8x128xf32> -> vector<8x128xf32>
    %c0_9 = arith.constant 0 : index
    %c0_10 = arith.constant 0 : index
    %10 = vector.load %arg5[%c0_9, %c0_10] : memref<1x128xf32, #tpu.memory_space<vmem>>, vector<1x128xf32>
    %11 = vector.broadcast %10 : vector<1x128xf32> to vector<8x128xf32>
    %12 = arith.addf %9, %11 : vector<8x128xf32>
    %cst_11 = arith.constant 0.000000e+00 : f32
    %13 = vector.broadcast %cst_11 : f32 to vector<8x128xf32>
    %14 = arith.maximumf %12, %13 : vector<8x128xf32>
    %c0_12 = arith.constant 0 : index
    %c0_13 = arith.constant 0 : index
    %15 = vector.load %arg6[%c0_12, %c0_13] : memref<128x4xf32, #tpu.memory_space<vmem>>, vector<128x4xf32>
    %cst_14 = arith.constant dense<0.000000e+00> : vector<8x4xf32>
    %16 = tpu.matmul %14, %15, %cst_14 {dimension_numbers = #tpu.dot_dimension_numbers<[1], [0], [0], [1], [0, 0, 1, 1], [], []>} : vector<8x128xf32>, vector<128x4xf32>, vector<8x4xf32> -> vector<8x4xf32>
    %c0_15 = arith.constant 0 : index
    %c0_16 = arith.constant 0 : index
    %17 = vector.load %arg7[%c0_15, %c0_16] : memref<1x4xf32, #tpu.memory_space<vmem>>, vector<1x4xf32>
    %18 = vector.broadcast %17 : vector<1x4xf32> to vector<8x4xf32>
    %19 = arith.addf %16, %18 : vector<8x4xf32>
    %c0_17 = arith.constant 0 : index
    %c0_18 = arith.constant 0 : index
    %20 = vector.load %arg8[%c0_17, %c0_18] : memref<8x4xf32, #tpu.memory_space<vmem>>, vector<8x4xf32>
    tpu.vector_store %arg8[%c0_17, %c0_18], %19 {strides = array<i32>} : memref<8x4xf32, #tpu.memory_space<vmem>>, vector<8x4xf32>,
    return
  }
  func.func @transform_0(%arg0: i32) -> (i32, i32) {
    %c0_i32 = arith.constant 0 : i32
    %c0_i32_0 = arith.constant 0 : i32
    return %arg0, %c0_i32 : i32, i32
  }
  func.func @transform_1(%arg0: i32) -> (i32, i32) {
    %c0_i32 = arith.constant 0 : i32
    %c0_i32_0 = arith.constant 0 : i32
    %c0_i32_1 = arith.constant 0 : i32
    return %c0_i32, %c0_i32_0 : i32, i32
  }
  func.func @transform_2(%arg0: i32) -> (i32, i32) {
    %c0_i32 = arith.constant 0 : i32
    %c0_i32_0 = arith.constant 0 : i32
    %c0_i32_1 = arith.constant 0 : i32
    return %c0_i32, %c0_i32_0 : i32, i32
  }
  func.func @transform_3(%arg0: i32) -> (i32, i32) {
    %c0_i32 = arith.constant 0 : i32
    %c0_i32_0 = arith.constant 0 : i32
    %c0_i32_1 = arith.constant 0 : i32
    return %c0_i32, %c0_i32_0 : i32, i32
  }
  func.func @transform_4(%arg0: i32) -> (i32, i32) {
    %c0_i32 = arith.constant 0 : i32
    %c0_i32_0 = arith.constant 0 : i32
    %c0_i32_1 = arith.constant 0 : i32
    return %c0_i32, %c0_i32_0 : i32, i32
  }
  func.func @transform_5(%arg0: i32) -> (i32, i32) {
    %c0_i32 = arith.constant 0 : i32
    %c0_i32_0 = arith.constant 0 : i32
    %c0_i32_1 = arith.constant 0 : i32
    return %c0_i32, %c0_i32_0 : i32, i32
  }
  func.func @transform_6(%arg0: i32) -> (i32, i32) {
    %c0_i32 = arith.constant 0 : i32
    %c0_i32_0 = arith.constant 0 : i32
    %c0_i32_1 = arith.constant 0 : i32
    return %c0_i32, %c0_i32_0 : i32, i32
  }
  func.func @transform_7(%arg0: i32) -> (i32, i32) {
    %c0_i32 = arith.constant 0 : i32
    %c0_i32_0 = arith.constant 0 : i32
    return %arg0, %c0_i32 : i32, i32
  }
}

</mosaic_0001>

<llo_original>
// kernel: tpu_custom_call.1
$region0: #{tpu_custom_call.1}
  #allocation0 [shape = 'u32[]', space=smem, size = 0x4, offset = 0x4, fixed_abs, tag = 'smem constant byte address 0x4 - core index']
  #allocation1 [shape = 'u32[144,128]{1,0:T(1,128)}', space=vmem, size = 0x12000, scoped, tag = 'internal scratch']
  %s0 = inlined_call_operand.vmem [shape: f32[8,8], index: 0, kind: input, shape index: {}]
  %s1 = inlined_call_operand.hbm [shape: f32[8,128], index: 1, kind: input, shape index: {}]
  %s2 = inlined_call_operand.vmem [shape: f32[1,128], index: 2, kind: input, shape index: {}]
  %s3 = inlined_call_operand.vmem [shape: f32[128,128], index: 3, kind: input, shape index: {}]
  %s4 = inlined_call_operand.vmem [shape: f32[1,128], index: 4, kind: input, shape index: {}]
  %s5 = inlined_call_operand.vmem [shape: f32[128,4], index: 5, kind: input, shape index: {}]
  %s6 = inlined_call_operand.vmem [shape: f32[1,4], index: 6, kind: input, shape index: {}]
  %s7 = inlined_call_operand.vmem [shape: f32[8,4], index: 7, kind: output, shape index: {}]
  %s8 = sld [smem:[#allocation0]]
  $region42: #{tpu_custom_call.1} parent=0
    _
  %s10 = ssub.s32 1, %s8
  %s11 = scalar_select 0, %s10, %s8
  $region1: #{tpu_custom_call.1} parent=0
    #allocation2 [shape = 'u8[4096]{0}', space=vmem, size = 0x1000, scoped, tag = 'input window, operand 1, single buffered']
    #allocation3 [shape = 's32[1]{0}', space=sflag, size = 0x4, scoped, tag = 'scoped memory for tpu_custom_call.1']
    %12 = vsyncpa [#allocation3], 0
    // Predicated region
    $region2: #{tpu_custom_call.1} parent=1 // pred_check
      _
    $region3: #{tpu_custom_call.1} parent=1 // pred_check_branch
      %14 = sbr.rel (0) target = $region5
    $region4: #{tpu_custom_call.1} parent=1 // pred_region
      _
    $region5: #{tpu_custom_call.1} parent=1 // pred_fallthru
      _
    // Predicated region
    $region6: #{tpu_custom_call.1} parent=1 // pred_check
      _
    $region7: #{tpu_custom_call.1} parent=1 // pred_check_branch
      %16 = sbr.rel (0) target = $region9
    $region8: #{tpu_custom_call.1} parent=1 // pred_region
      %s18 = ssub.s32 128, 128
      %19 = vsyncadd [#allocation3], %s18
      %s21 = sshll.u32 [#allocation2], 4
      %s22 = int_to_ptr.vmem [resolvable:$true] %s21
      %24 = dma.hbm_to_vmem [thread:$0]  %s1, 128, %s22, [#allocation3]
    $region9: #{tpu_custom_call.1} parent=1 // pred_fallthru
      _
    // Predicated region
    $region10: #{tpu_custom_call.1} parent=1 // pred_check
      _
    $region11: #{tpu_custom_call.1} parent=1 // pred_check_branch
      %26 = sbr.rel (0) target = $region13
    $region12: #{tpu_custom_call.1} parent=1 // pred_region
      _
    $region13: #{tpu_custom_call.1} parent=1 // pred_fallthru
      _
    // Predicated region
    $region14: #{tpu_custom_call.1} parent=1 // pred_check
      _
    $region15: #{tpu_custom_call.1} parent=1 // pred_check_branch
      %28 = sbr.rel (0) target = $region17
    $region16: #{tpu_custom_call.1} parent=1 // pred_region
      _
    $region17: #{tpu_custom_call.1} parent=1 // pred_fallthru
      _
    // Predicated region
    $region18: #{tpu_custom_call.1} parent=1 // pred_check
      _
    $region19: #{tpu_custom_call.1} parent=1 // pred_check_branch
      %30 = sbr.rel (0) target = $region21
    $region20: #{tpu_custom_call.1} parent=1 // pred_region
      _
    $region21: #{tpu_custom_call.1} parent=1 // pred_fallthru
      _
    // Predicated region
    $region22: #{tpu_custom_call.1} parent=1 // pred_check
      _
    $region23: #{tpu_custom_call.1} parent=1 // pred_check_branch
      %32 = sbr.rel (0) target = $region25
    $region24: #{tpu_custom_call.1} parent=1 // pred_region
      _
    $region25: #{tpu_custom_call.1} parent=1 // pred_fallthru
      _
    // Predicated region
    $region26: #{tpu_custom_call.1} parent=1 // pred_check
      _
    $region27: #{tpu_custom_call.1} parent=1 // pred_check_branch
      %34 = sbr.rel (0) target = $region29
    $region28: #{tpu_custom_call.1} parent=1 // pred_region
      _
    $region29: #{tpu_custom_call.1} parent=1 // pred_fallthru
      _
    // Predicated region
    $region30: #{tpu_custom_call.1} parent=1 // pred_check
      _
    $region31: #{tpu_custom_call.1} parent=1 // pred_check_branch
      %36 = sbr.rel (0) target = $region33
    $region32: #{tpu_custom_call.1} parent=1 // pred_region
      %37 = dma.done [#allocation3], 128
    $region33: #{tpu_custom_call.1} parent=1 // pred_fallthru
      _
    %v38 = vld [vmem:[%s0] sm:$0xff]
    %v39 = vld [vmem:[#allocation2] sm:$0xff]
    %v40 = vld [vmem:[%s2] sm:$0x1]
    %v42 = vlaneseq
    %v43 = vshrl.u32 %v42, 7
    %v44 = vsub.s32 0, %v43
    %v45 = vrot.slane %v40, %v44
    %vm47 = vcmask 64512
    %v49 = vsel %vm47, %v38, 0
    %51 = vmatprep.subr.mxu0 0.0
    %52 = vmatpush1.msra.mxu0 %v39
    %53 = vmatprep.subr.mxu0 0.0
    %54 = vmatpush1.msra.mxu0 0.0
    %55 = vmatprep.subr.mxu0 0.0
    %56 = vmatpush1.msra.mxu0 0.0
    %57 = vmatprep.subr.mxu0 0.0
    %58 = vmatpush1.msra.mxu0 0.0
    %59 = vmatprep.subr.mxu0 0.0
    %60 = vmatpush1.msra.mxu0 0.0
    %61 = vmatprep.subr.mxu0 0.0
    %62 = vmatpush1.msra.mxu0 0.0
    %63 = vmatprep.subr.mxu0 0.0
    %64 = vmatpush1.msra.mxu0 0.0
    %65 = vmatprep.subr.mxu0 0.0
    %66 = vmatpush1.msra.mxu0 0.0
    %67 = vmatprep.subr.mxu0 0.0
    %68 = vmatpush1.msra.mxu0 0.0
    %69 = vmatprep.subr.mxu0 0.0
    %70 = vmatpush1.msra.mxu0 0.0
    %71 = vmatprep.subr.mxu0 0.0
    %72 = vmatpush1.msra.mxu0 0.0
    %73 = vmatprep.subr.mxu0 0.0
    %74 = vmatpush1.msra.mxu0 0.0
    %75 = vmatprep.subr.mxu0 0.0
    %76 = vmatpush1.msra.mxu0 0.0
    %77 = vmatprep.subr.mxu0 0.0
    %78 = vmatpush1.msra.mxu0 0.0
    %79 = vmatprep.subr.mxu0 0.0
    %80 = vmatpush1.msra.mxu0 0.0
    %81 = vmatprep.subr.mxu0 0.0
    %82 = vmatpush1.msra.mxu0 0.0
    %83 = vmatprep.subr.mxu0 0.0
    %84 = vmatpush1.msra.mxu0 0.0
    %85 = vmatprep.subr.mxu0 0.0
    %86 = vmatpush1.msra.mxu0 0.0
    %87 = vmatprep.subr.mxu0 0.0
    %88 = vmatpush1.msra.mxu0 0.0
    %89 = vmatprep.subr.mxu0 0.0
    %90 = vmatpush1.msra.mxu0 0.0
    %91 = vmatprep.subr.mxu0 0.0
    %92 = vmatpush1.msra.mxu0 0.0
    %93 = vmatprep.subr.mxu0 0.0
    %94 = vmatpush1.msra.mxu0 0.0
    %95 = vmatprep.subr.mxu0 0.0
    %96 = vmatpush1.msra.mxu0 0.0
    %97 = vmatprep.subr.mxu0 0.0
    %98 = vmatpush1.msra.mxu0 0.0
    %99 = vmatprep.subr.mxu0 0.0
    %100 = vmatpush1.msra.mxu0 0.0
    %101 = vmatprep.subr.mxu0 0.0
    %102 = vmatpush1.msra.mxu0 0.0
    %103 = vmatprep.subr.mxu0 0.0
    %104 = vmatpush1.msra.mxu0 0.0
    %105 = vmatprep.subr.mxu0 0.0
    %106 = vmatpush1.msra.mxu0 0.0
    %107 = vmatprep.subr.mxu0 0.0
    %108 = vmatpush1.msra.mxu0 0.0
    %109 = vmatprep.subr.mxu0 0.0
    %110 = vmatpush1.msra.mxu0 0.0
    %111 = vmatprep.subr.mxu0 0.0
    %112 = vmatpush1.msra.mxu0 0.0
    %113 = vmatprep.subr.mxu0 0.0
    %114 = vmatpush1.msra.mxu0 0.0
    %115 = vmatprep.mubr.f32.mxu0 0.0
    %116 = vmatmul.mubr.f32.gmra.mrb[0].mxu0 %v49
    %v117 = vpop.f32.mrb[0].mxu0
    %v118 = vadd.f32 %v45, %v117
    %v119 = vpop.f32.mrb[0].mxu0
    %120 = vdwg.mxu0
    %v121 = vmax.f32 %v118, 0.0
    %v122 = vld [vmem:[%s3] sm:$0xff]
    %v123 = vld [vmem:[%s3 + $0x8] sm:$0xff]
    %v124 = vld [vmem:[%s3 + $0x10] sm:$0xff]
    %v125 = vld [vmem:[%s3 + $0x18] sm:$0xff]
    %v126 = vld [vmem:[%s3 + $0x20] sm:$0xff]
    %v127 = vld [vmem:[%s3 + $0x28] sm:$0xff]
    %v128 = vld [vmem:[%s3 + $0x30] sm:$0xff]
    %v129 = vld [vmem:[%s3 + $0x38] sm:$0xff]
    %v130 = vld [vmem:[%s3 + $0x40] sm:$0xff]
    %v131 = vld [vmem:[%s3 + $0x48] sm:$0xff]
    %v132 = vld [vmem:[%s3 + $0x50] sm:$0xff]
    %v133 = vld [vmem:[%s3 + $0x58] sm:$0xff]
    %v134 = vld [vmem:[%s3 + $0x60] sm:$0xff]
    %v135 = vld [vmem:[%s3 + $0x68] sm:$0xff]
    %v136 = vld [vmem:[%s3 + $0x70] sm:$0xff]
    %v137 = vld [vmem:[%s3 + $0x78] sm:$0xff]
    %v138 = vld [vmem:[%s4] sm:$0x1]
    %v140 = vlaneseq
    %v141 = vshrl.u32 %v140, 7
    %v142 = vsub.s32 0, %v141
    %v143 = vrot.slane %v138, %v142
    %145 = vmatprep.subr.mxu0 0.0
    %146 = vmatpush1.msra.mxu0 %v122
    %147 = vmatprep.subr.mxu0 0.0
    %148 = vmatpush1.msra.mxu0 %v123
    %149 = vmatprep.subr.mxu0 0.0
    %150 = vmatpush1.msra.mxu0 %v124
    %151 = vmatprep.subr.mxu0 0.0
    %152 = vmatpush1.msra.mxu0 %v125
    %153 = vmatprep.subr.mxu0 0.0
    %154 = vmatpush1.msra.mxu0 %v126
    %155 = vmatprep.subr.mxu0 0.0
    %156 = vmatpush1.msra.mxu0 %v127
    %157 = vmatprep.subr.mxu0 0.0
    %158 = vmatpush1.msra.mxu0 %v128
    %159 = vmatprep.subr.mxu0 0.0
    %160 = vmatpush1.msra.mxu0 %v129
    %161 = vmatprep.subr.mxu0 0.0
    %162 = vmatpush1.msra.mxu0 %v130
    %163 = vmatprep.subr.mxu0 0.0
    %164 = vmatpush1.msra.mxu0 %v131
    %165 = vmatprep.subr.mxu0 0.0
    %166 = vmatpush1.msra.mxu0 %v132
    %167 = vmatprep.subr.mxu0 0.0
    %168 = vmatpush1.msra.mxu0 %v133
    %169 = vmatprep.subr.mxu0 0.0
    %170 = vmatpush1.msra.mxu0 %v134
    %171 = vmatprep.subr.mxu0 0.0
    %172 = vmatpush1.msra.mxu0 %v135
    %173 = vmatprep.subr.mxu0 0.0
    %174 = vmatpush1.msra.mxu0 %v136
    %175 = vmatprep.subr.mxu0 0.0
    %176 = vmatpush1.msra.mxu0 %v137
    %177 = vmatprep.subr.mxu0 0.0
    %178 = vmatpush1.msra.mxu0 0.0
    %179 = vmatprep.subr.mxu0 0.0
    %180 = vmatpush1.msra.mxu0 0.0
    %181 = vmatprep.subr.mxu0 0.0
    %182 = vmatpush1.msra.mxu0 0.0
    %183 = vmatprep.subr.mxu0 0.0
    %184 = vmatpush1.msra.mxu0 0.0
    %185 = vmatprep.subr.mxu0 0.0
    %186 = vmatpush1.msra.mxu0 0.0
    %187 = vmatprep.subr.mxu0 0.0
    %188 = vmatpush1.msra.mxu0 0.0
    %189 = vmatprep.subr.mxu0 0.0
    %190 = vmatpush1.msra.mxu0 0.0
    %191 = vmatprep.subr.mxu0 0.0
    %192 = vmatpush1.msra.mxu0 0.0
    %193 = vmatprep.subr.mxu0 0.0
    %194 = vmatpush1.msra.mxu0 0.0
    %195 = vmatprep.subr.mxu0 0.0
    %196 = vmatpush1.msra.mxu0 0.0
    %197 = vmatprep.subr.mxu0 0.0
    %198 = vmatpush1.msra.mxu0 0.0
    %199 = vmatprep.subr.mxu0 0.0
    %200 = vmatpush1.msra.mxu0 0.0
    %201 = vmatprep.subr.mxu0 0.0
    %202 = vmatpush1.msra.mxu0 0.0
    %203 = vmatprep.subr.mxu0 0.0
    %204 = vmatpush1.msra.mxu0 0.0
    %205 = vmatprep.subr.mxu0 0.0
    %206 = vmatpush1.msra.mxu0 0.0
    %207 = vmatprep.subr.mxu0 0.0
    %208 = vmatpush1.msra.mxu0 0.0
    %209 = vmatprep.mubr.f32.mxu0 0.0
    %210 = vmatmul.mubr.f32.gmra.mrb[0].mxu0 %v121
    %v211 = vpop.f32.mrb[0].mxu0
    %v212 = vadd.f32 %v143, %v211
    %v213 = vpop.f32.mrb[0].mxu0
    %214 = vdwg.mxu0
    %v215 = vmax.f32 %v212, 0.0
    %v216 = vld [vmem:[%s5] sm:$0xff]
    %v217 = vld [vmem:[%s5 + $0x8] sm:$0xff]
    %v218 = vld [vmem:[%s5 + $0x10] sm:$0xff]
    %v219 = vld [vmem:[%s5 + $0x18] sm:$0xff]
    %v220 = vld [vmem:[%s5 + $0x20] sm:$0xff]
    %v221 = vld [vmem:[%s5 + $0x28] sm:$0xff]
    %v222 = vld [vmem:[%s5 + $0x30] sm:$0xff]
    %v223 = vld [vmem:[%s5 + $0x38] sm:$0xff]
    %v224 = vld [vmem:[%s5 + $0x40] sm:$0xff]
    %v225 = vld [vmem:[%s5 + $0x48] sm:$0xff]
    %v226 = vld [vmem:[%s5 + $0x50] sm:$0xff]
    %v227 = vld [vmem:[%s5 + $0x58] sm:$0xff]
    %v228 = vld [vmem:[%s5 + $0x60] sm:$0xff]
    %v229 = vld [vmem:[%s5 + $0x68] sm:$0xff]
    %v230 = vld [vmem:[%s5 + $0x70] sm:$0xff]
    %v231 = vld [vmem:[%s5 + $0x78] sm:$0xff]
    %v232 = vld [vmem:[%s6] sm:$0x1]
    %v234 = vlaneseq
    %v235 = vshrl.u32 %v234, 7
    %v236 = vsub.s32 0, %v235
    %v237 = vrot.slane %v232, %v236
    %239 = vmatprep.subr.mxu0 0.0
    %240 = vmatpush1.msra.mxu0 %v216
    %241 = vmatprep.subr.mxu0 0.0
    %242 = vmatpush1.msra.mxu0 %v217
    %243 = vmatprep.subr.mxu0 0.0
    %244 = vmatpush1.msra.mxu0 %v218
    %245 = vmatprep.subr.mxu0 0.0
    %246 = vmatpush1.msra.mxu0 %v219
    %247 = vmatprep.subr.mxu0 0.0
    %248 = vmatpush1.msra.mxu0 %v220
    %249 = vmatprep.subr.mxu0 0.0
    %250 = vmatpush1.msra.mxu0 %v221
    %251 = vmatprep.subr.mxu0 0.0
    %252 = vmatpush1.msra.mxu0 %v222
    %253 = vmatprep.subr.mxu0 0.0
    %254 = vmatpush1.msra.mxu0 %v223
    %255 = vmatprep.subr.mxu0 0.0
    %256 = vmatpush1.msra.mxu0 %v224
    %257 = vmatprep.subr.mxu0 0.0
    %258 = vmatpush1.msra.mxu0 %v225
    %259 = vmatprep.subr.mxu0 0.0
    %260 = vmatpush1.msra.mxu0 %v226
    %261 = vmatprep.subr.mxu0 0.0
    %262 = vmatpush1.msra.mxu0 %v227
    %263 = vmatprep.subr.mxu0 0.0
    %264 = vmatpush1.msra.mxu0 %v228
    %265 = vmatprep.subr.mxu0 0.0
    %266 = vmatpush1.msra.mxu0 %v229
    %267 = vmatprep.subr.mxu0 0.0
    %268 = vmatpush1.msra.mxu0 %v230
    %269 = vmatprep.subr.mxu0 0.0
    %270 = vmatpush1.msra.mxu0 %v231
    %271 = vmatprep.subr.mxu0 0.0
    %272 = vmatpush1.msra.mxu0 0.0
    %273 = vmatprep.subr.mxu0 0.0
    %274 = vmatpush1.msra.mxu0 0.0
    %275 = vmatprep.subr.mxu0 0.0
    %276 = vmatpush1.msra.mxu0 0.0
    %277 = vmatprep.subr.mxu0 0.0
    %278 = vmatpush1.msra.mxu0 0.0
    %279 = vmatprep.subr.mxu0 0.0
    %280 = vmatpush1.msra.mxu0 0.0
    %281 = vmatprep.subr.mxu0 0.0
    %282 = vmatpush1.msra.mxu0 0.0
    %283 = vmatprep.subr.mxu0 0.0
    %284 = vmatpush1.msra.mxu0 0.0
    %285 = vmatprep.subr.mxu0 0.0
    %286 = vmatpush1.msra.mxu0 0.0
    %287 = vmatprep.subr.mxu0 0.0
    %288 = vmatpush1.msra.mxu0 0.0
    %289 = vmatprep.subr.mxu0 0.0
    %290 = vmatpush1.msra.mxu0 0.0
    %291 = vmatprep.subr.mxu0 0.0
    %292 = vmatpush1.msra.mxu0 0.0
    %293 = vmatprep.subr.mxu0 0.0
    %294 = vmatpush1.msra.mxu0 0.0
    %295 = vmatprep.subr.mxu0 0.0
    %296 = vmatpush1.msra.mxu0 0.0
    %297 = vmatprep.subr.mxu0 0.0
    %298 = vmatpush1.msra.mxu0 0.0
    %299 = vmatprep.subr.mxu0 0.0
    %300 = vmatpush1.msra.mxu0 0.0
    %301 = vmatprep.subr.mxu0 0.0
    %302 = vmatpush1.msra.mxu0 0.0
    %303 = vmatprep.mubr.f32.mxu0 0.0
    %304 = vmatmul.mubr.f32.gmra.mrb[0].mxu0 %v215
    %v305 = vpop.f32.mrb[0].mxu0
    %v306 = vadd.f32 %v237, %v305
    %v307 = vpop.f32.mrb[0].mxu0
    %308 = vdwg.mxu0
    %vm309 = vcmask 31744
    %310 = vst.msk [vmem:[%s7] sm:$0xff] %vm309, %v306
    // Predicated region
    $region34: #{tpu_custom_call.1} parent=1 // pred_check
      _
    $region35: #{tpu_custom_call.1} parent=1 // pred_check_branch
      %312 = sbr.rel (0) target = $region37
    $region36: #{tpu_custom_call.1} parent=1 // pred_region
      _
    $region37: #{tpu_custom_call.1} parent=1 // pred_fallthru
      _
    // Predicated region
    $region38: #{tpu_custom_call.1} parent=1 // pred_check
      _
    $region39: #{tpu_custom_call.1} parent=1 // pred_check_branch
      %314 = sbr.rel (0) target = $region41
    $region40: #{tpu_custom_call.1} parent=1 // pred_region
      _
    $region41: #{tpu_custom_call.1} parent=1 // pred_fallthru
      _
    %315 = vsyncpa [#allocation3], 1

</llo_original>
